<compile_context>
chip_gen: v7x
topology: tpu7x:2x2x1
jax: 0.10.0
libtpu: 0.0.40
codegen_flags: <defaults>
</compile_context>

<pallas_src>
import jax
import jax.numpy as jnp
from jax.experimental import pallas as pl
from jax.experimental.pallas import tpu as pltpu

LANE = 128            # lane-dense padded width for all hidden / output dims
NEG_LARGE = -1e30     # bias for padded logit lanes -> exp underflows to 0


# --------------------------------------------------------------------------- #
# Kernel
# --------------------------------------------------------------------------- #
def mlp_kernel(x_ref,
               w0_ref, b0_ref,     # f0: 784 -> 128 (63 real), bias
               w2_ref,             # f2: 128 -> 128 (63 -> 13 real), no bias
               w45_ref, b45_ref,   # folded f4+f5: 128 -> 128 (13 -> 12 real)
               w78_ref, b78_ref,   # folded f7+f8: 128 -> 128 (12 -> 10 real)
               o_ref):
    # bf16 operands on the MXU, f32 accumulation; elementwise kept in f32.
    # If the caller already supplies bf16 x this cast is a no-op.
    xb = x_ref[...].astype(jnp.bfloat16)

    # f0 + f1 : Linear(784, 63) + ReLU
    h = jnp.dot(xb, w0_ref[...], preferred_element_type=jnp.float32) + b0_ref[...]
    h = jnp.maximum(h, 0.0)

    # f2 + f3 : Linear(63, 13, bias=False) + ReLU
    h = jnp.dot(h.astype(jnp.bfloat16), w2_ref[...],
                preferred_element_type=jnp.float32)
    h = jnp.maximum(h, 0.0)

    # f4 + f5 (folded, no activation between) + f6 ReLU
    h = jnp.dot(h.astype(jnp.bfloat16), w45_ref[...],
                preferred_element_type=jnp.float32) + b45_ref[...]
    h = jnp.maximum(h, 0.0)

    # f7 + f8 (folded, no activation between)
    logits = jnp.dot(h.astype(jnp.bfloat16), w78_ref[...],
                     preferred_element_type=jnp.float32) + b78_ref[...]
    # Padded lanes carry bias = -1e30, so they never win the max and
    # contribute exp(...) == 0 to the sum below.

    # f9 : LogSoftmax(dim=1), f32, numerically stable
    m = jnp.max(logits, axis=-1, keepdims=True)
    shifted = logits - m
    lse = jnp.log(jnp.sum(jnp.exp(shifted), axis=-1, keepdims=True))
    o_ref[...] = (shifted - lse).astype(o_ref.dtype)


# --------------------------------------------------------------------------- #
# Parameters
# --------------------------------------------------------------------------- #
def make_raw_params(key):
    """PyTorch-style (Kaiming-uniform-ish) init, f32, weights stored (in, out)."""
    dims = [
        ("0", 784, 63, True),
        ("2", 63, 13, False),
        ("4", 13, 12, False),
        ("5", 12, 12, True),
        ("7", 12, 12, True),
        ("8", 12, 10, True),
    ]
    p = {}
    for name, fin, fout, has_bias in dims:
        key, kw, kb = jax.random.split(key, 3)
        bound = 1.0 / (fin ** 0.5)
        p["w" + name] = jax.random.uniform(kw, (fin, fout), jnp.float32, -bound, bound)
        if has_bias:
            p["b" + name] = jax.random.uniform(kb, (1, fout), jnp.float32, -bound, bound)
    return p


def _pad2(a, rows, cols, fill=0.0):
    r, c = a.shape
    return jnp.pad(a, ((0, rows - r), (0, cols - c)), constant_values=fill)


def pack_params(raw):
    """Fold activation-free pairs (f32), pad to 128 lanes, cast weights to bf16."""
    w45 = raw["w4"] @ raw["w5"]                # (13, 12)
    b45 = raw["b5"]                            # (1, 12)
    w78 = raw["w7"] @ raw["w8"]                # (12, 10)
    b78 = raw["b7"] @ raw["w8"] + raw["b8"]    # (1, 10)

    b78_pad = jnp.concatenate(
        [b78, jnp.full((1, LANE - b78.shape[1]), NEG_LARGE, jnp.float32)], axis=1)

    return {
        "w0":  _pad2(raw["w0"], 784, LANE).astype(jnp.bfloat16),
        "b0":  _pad2(raw["b0"], 1, LANE),
        "w2":  _pad2(raw["w2"], LANE, LANE).astype(jnp.bfloat16),
        "w45": _pad2(w45, LANE, LANE).astype(jnp.bfloat16),
        "b45": _pad2(b45, 1, LANE),
        "w78": _pad2(w78, LANE, LANE).astype(jnp.bfloat16),
        "b78": b78_pad,
    }


# --------------------------------------------------------------------------- #
# Wrapper
# --------------------------------------------------------------------------- #
def _round_up(a, m):
    return ((a + m - 1) // m) * m


def _choose_tm(B):
    """Batch tile: big enough to amortize per-step overhead (target 512-1024),
    small enough that the grid has >= 2 steps once B >= 16 (v7x megacore)."""
    if B < 16:
        return _round_up(B, 8)
    return min(1024, _round_up(pl.cdiv(B, 2), 8))


def linearrelu_21_forward(x, packed):
    """x: (B, 1, 28, 28) or (B, 784), float32 or bfloat16 -> (B, 10) log-probs.

    Pass bf16 x (produced upstream) to halve the dominant HBM stream; the
    kernel casts internally either way, no wrapper-side astype pass is added.
    """
    B = x.shape[0]
    x2d = x.reshape(B, 784)          # metadata-only for contiguous input

    TM = _choose_tm(B)
    n_tiles = pl.cdiv(B, TM)         # ragged last block handled by Pallas

    def const_spec(shape):
        # Same block every grid step -> fetched once, VMEM-resident.
        return pl.BlockSpec(shape, lambda i: (0, 0))

    out = pl.pallas_call(
        mlp_kernel,
        out_shape=jax.ShapeDtypeStruct((B, LANE), jnp.float32),
        grid=(n_tiles,),
        in_specs=[
            pl.BlockSpec((TM, 784), lambda i: (i, 0)),        # x tile
            const_spec((784, LANE)), const_spec((1, LANE)),   # w0, b0
            const_spec((LANE, LANE)),                         # w2
            const_spec((LANE, LANE)), const_spec((1, LANE)),  # w45, b45
            const_spec((LANE, LANE)), const_spec((1, LANE)),  # w78, b78
        ],
        out_specs=pl.BlockSpec((TM, LANE), lambda i: (i, 0)),
        compiler_params=pltpu.CompilerParams(
            dimension_semantics=("parallel",)),
    )(x2d, packed["w0"], packed["b0"], packed["w2"],
      packed["w45"], packed["b45"], packed["w78"], packed["b78"])

    # Module-facing (B, 10) view. Consumers able to take the lane-dense
    # (B, 128) block directly should do so to avoid this narrow-slice pass.
    return out[:, :10]


# --------------------------------------------------------------------------- #
# References
# --------------------------------------------------------------------------- #
def reference_bf16(x, raw):
    """Matches kernel numerics: folded weights, bf16 operands, f32 accumulation."""
    B = x.shape[0]
    w45 = (raw["w4"] @ raw["w5"]).astype(jnp.bfloat16)
    w78 = (raw["w7"] @ raw["w8"]).astype(jnp.bfloat16)
    b78 = raw["b7"] @ raw["w8"] + raw["b8"]

    def bdot(a, w):
        return jnp.dot(a.astype(jnp.bfloat16), w,
                       preferred_element_type=jnp.float32)

    h = x.reshape(B, 784).astype(jnp.float32)
    h = jnp.maximum(bdot(h, raw["w0"].astype(jnp.bfloat16)) + raw["b0"], 0.0)
    h = jnp.maximum(bdot(h, raw["w2"].astype(jnp.bfloat16)), 0.0)
    h = jnp.maximum(bdot(h, w45) + raw["b5"], 0.0)
    logits = bdot(h, w78) + b78
    return jax.nn.log_softmax(logits, axis=1)


def reference_f32(x, raw):
    """Original module, unfolded, full f32 (same input values as the kernel)."""
    B = x.shape[0]
    h = x.reshape(B, 784).astype(jnp.float32)
    h = jnp.maximum(h @ raw["w0"] + raw["b0"], 0.0)
    h = jnp.maximum(h @ raw["w2"], 0.0)
    h = h @ raw["w4"]
    h = jnp.maximum(h @ raw["w5"] + raw["b5"], 0.0)
    h = h @ raw["w7"] + raw["b7"]
    logits = h @ raw["w8"] + raw["b8"]
    return jax.nn.log_softmax(logits, axis=1)


# --------------------------------------------------------------------------- #
if __name__ == "__main__":
    key = jax.random.PRNGKey(0)
    kx, kp = jax.random.split(key)

    # MNIST-shaped batch; produced directly in bf16 at the source (no extra
    # HBM pass), per the review: the x stream is ~85% of kernel HBM bytes.
    x = jax.random.normal(kx, (8, 1, 28, 28), jnp.float32).astype(jnp.bfloat16)
    raw = make_raw_params(kp)
    packed = pack_params(raw)

    out = linearrelu_21_forward(x, packed)
    out = jax.block_until_ready(out)
    assert out.shape == (8, 10)

    # Tight check vs a reference with identical (bf16-operand, folded) numerics.
    ref_b = reference_bf16(x, raw)
    assert jnp.allclose(out, ref_b, atol=2e-3, rtol=2e-3), "mismatch vs bf16 reference"

    # Loose sanity check vs the original full-precision unfolded module
    # (same bf16-valued inputs, f32 weights/compute).
    ref_f = reference_f32(x, raw)
    assert jnp.allclose(out, ref_f, atol=5e-2, rtol=5e-2), "mismatch vs f32 reference"

    print("KERNEL_OK")
</pallas_src>

<mosaic_0001>
module attributes {stable_mosaic.version = 11 : i64} {
  func.func @mlp_kernel(%arg0: i32, %arg1: memref<8x784xbf16, #tpu.memory_space<vmem>>, %arg2: memref<784x128xbf16, #tpu.memory_space<vmem>>, %arg3: memref<1x128xf32, #tpu.memory_space<vmem>>, %arg4: memref<128x128xbf16, #tpu.memory_space<vmem>>, %arg5: memref<128x128xbf16, #tpu.memory_space<vmem>>, %arg6: memref<1x128xf32, #tpu.memory_space<vmem>>, %arg7: memref<128x128xbf16, #tpu.memory_space<vmem>>, %arg8: memref<1x128xf32, #tpu.memory_space<vmem>>, %arg9: memref<8x128xf32, #tpu.memory_space<vmem>>) attributes {dimension_semantics = [#tpu.dimension_semantics<parallel>], iteration_bounds = array<i64: 1>, scalar_prefetch = 0 : i64, scratch_operands = 0 : i64, tpu.core_type = #tpu.core_type<tc>, window_params = [{transform_indices = @transform_0, window_bounds = array<i64: 8, 784>}, {pipeline_mode = #tpu.pipeline_mode<synchronous>, transform_indices = @transform_1, window_bounds = array<i64: 784, 128>}, {pipeline_mode = #tpu.pipeline_mode<synchronous>, transform_indices = @transform_2, window_bounds = array<i64: 1, 128>}, {pipeline_mode = #tpu.pipeline_mode<synchronous>, transform_indices = @transform_3, window_bounds = array<i64: 128, 128>}, {pipeline_mode = #tpu.pipeline_mode<synchronous>, transform_indices = @transform_4, window_bounds = array<i64: 128, 128>}, {pipeline_mode = #tpu.pipeline_mode<synchronous>, transform_indices = @transform_5, window_bounds = array<i64: 1, 128>}, {pipeline_mode = #tpu.pipeline_mode<synchronous>, transform_indices = @transform_6, window_bounds = array<i64: 128, 128>}, {pipeline_mode = #tpu.pipeline_mode<synchronous>, transform_indices = @transform_7, window_bounds = array<i64: 1, 128>}, {transform_indices = @transform_8, window_bounds = array<i64: 8, 128>}]} {
    %c0 = arith.constant 0 : index
    %c0_0 = arith.constant 0 : index
    %0 = vector.load %arg1[%c0, %c0_0] : memref<8x784xbf16, #tpu.memory_space<vmem>>, vector<8x784xbf16>
    %c0_1 = arith.constant 0 : index
    %c0_2 = arith.constant 0 : index
    %1 = vector.load %arg2[%c0_1, %c0_2] : memref<784x128xbf16, #tpu.memory_space<vmem>>, vector<784x128xbf16>
    %cst = arith.constant dense<0.000000e+00> : vector<8x128xf32>
    %2 = tpu.matmul %0, %1, %cst {dimension_numbers = #tpu.dot_dimension_numbers<[1], [0], [0], [1], [0, 0, 1, 1], [], []>} : vector<8x784xbf16>, vector<784x128xbf16>, vector<8x128xf32> -> vector<8x128xf32>
    %c0_3 = arith.constant 0 : index
    %c0_4 = arith.constant 0 : index
    %3 = vector.load %arg3[%c0_3, %c0_4] : memref<1x128xf32, #tpu.memory_space<vmem>>, vector<1x128xf32>
    %4 = vector.broadcast %3 : vector<1x128xf32> to vector<8x128xf32>
    %5 = arith.addf %2, %4 : vector<8x128xf32>
    %cst_5 = arith.constant 0.000000e+00 : f32
    %6 = vector.broadcast %cst_5 : f32 to vector<8x128xf32>
    %7 = arith.maximumf %5, %6 : vector<8x128xf32>
    %8 = arith.truncf %7 : vector<8x128xf32> to vector<8x128xbf16>
    %c0_6 = arith.constant 0 : index
    %c0_7 = arith.constant 0 : index
    %9 = vector.load %arg4[%c0_6, %c0_7] : memref<128x128xbf16, #tpu.memory_space<vmem>>, vector<128x128xbf16>
    %cst_8 = arith.constant dense<0.000000e+00> : vector<8x128xf32>
    %10 = tpu.matmul %8, %9, %cst_8 {dimension_numbers = #tpu.dot_dimension_numbers<[1], [0], [0], [1], [0, 0, 1, 1], [], []>} : vector<8x128xbf16>, vector<128x128xbf16>, vector<8x128xf32> -> vector<8x128xf32>
    %cst_9 = arith.constant 0.000000e+00 : f32
    %11 = vector.broadcast %cst_9 : f32 to vector<8x128xf32>
    %12 = arith.maximumf %10, %11 : vector<8x128xf32>
    %13 = arith.truncf %12 : vector<8x128xf32> to vector<8x128xbf16>
    %c0_10 = arith.constant 0 : index
    %c0_11 = arith.constant 0 : index
    %14 = vector.load %arg5[%c0_10, %c0_11] : memref<128x128xbf16, #tpu.memory_space<vmem>>, vector<128x128xbf16>
    %cst_12 = arith.constant dense<0.000000e+00> : vector<8x128xf32>
    %15 = tpu.matmul %13, %14, %cst_12 {dimension_numbers = #tpu.dot_dimension_numbers<[1], [0], [0], [1], [0, 0, 1, 1], [], []>} : vector<8x128xbf16>, vector<128x128xbf16>, vector<8x128xf32> -> vector<8x128xf32>
    %c0_13 = arith.constant 0 : index
    %c0_14 = arith.constant 0 : index
    %16 = vector.load %arg6[%c0_13, %c0_14] : memref<1x128xf32, #tpu.memory_space<vmem>>, vector<1x128xf32>
    %17 = vector.broadcast %16 : vector<1x128xf32> to vector<8x128xf32>
    %18 = arith.addf %15, %17 : vector<8x128xf32>
    %cst_15 = arith.constant 0.000000e+00 : f32
    %19 = vector.broadcast %cst_15 : f32 to vector<8x128xf32>
    %20 = arith.maximumf %18, %19 : vector<8x128xf32>
    %21 = arith.truncf %20 : vector<8x128xf32> to vector<8x128xbf16>
    %c0_16 = arith.constant 0 : index
    %c0_17 = arith.constant 0 : index
    %22 = vector.load %arg7[%c0_16, %c0_17] : memref<128x128xbf16, #tpu.memory_space<vmem>>, vector<128x128xbf16>
    %cst_18 = arith.constant dense<0.000000e+00> : vector<8x128xf32>
    %23 = tpu.matmul %21, %22, %cst_18 {dimension_numbers = #tpu.dot_dimension_numbers<[1], [0], [0], [1], [0, 0, 1, 1], [], []>} : vector<8x128xbf16>, vector<128x128xbf16>, vector<8x128xf32> -> vector<8x128xf32>
    %c0_19 = arith.constant 0 : index
    %c0_20 = arith.constant 0 : index
    %24 = vector.load %arg8[%c0_19, %c0_20] : memref<1x128xf32, #tpu.memory_space<vmem>>, vector<1x128xf32>
    %25 = vector.broadcast %24 : vector<1x128xf32> to vector<8x128xf32>
    %26 = arith.addf %23, %25 : vector<8x128xf32>
    %cst_21 = arith.constant dense<0xFF800000> : vector<8xf32>
    %27 = vector.multi_reduction <maximumf>, %26, %cst_21 [1] : vector<8x128xf32> to vector<8xf32>
    %28 = vector.shape_cast %27 : vector<8xf32> to vector<8x1xf32>
    %29 = vector.broadcast %28 : vector<8x1xf32> to vector<8x128xf32>
    %30 = arith.subf %26, %29 : vector<8x128xf32>
    %31 = math.exp %30 : vector<8x128xf32>
    %cst_22 = arith.constant dense<0.000000e+00> : vector<8xf32>
    %32 = vector.multi_reduction <add>, %31, %cst_22 [1] : vector<8x128xf32> to vector<8xf32>
    %33 = vector.shape_cast %32 : vector<8xf32> to vector<8x1xf32>
    %34 = math.log %33 : vector<8x1xf32>
    %35 = vector.broadcast %34 : vector<8x1xf32> to vector<8x128xf32>
    %36 = arith.subf %30, %35 : vector<8x128xf32>
    %c0_23 = arith.constant 0 : index
    %c0_24 = arith.constant 0 : index
    %37 = vector.load %arg9[%c0_23, %c0_24] : memref<8x128xf32, #tpu.memory_space<vmem>>, vector<8x128xf32>
    tpu.vector_store %arg9[%c0_23, %c0_24], %36 {strides = array<i32>} : memref<8x128xf32, #tpu.memory_space<vmem>>, vector<8x128xf32>,
    return
  }
  func.func @transform_0(%arg0: i32) -> (i32, i32) {
    %c0_i32 = arith.constant 0 : i32
    %c0_i32_0 = arith.constant 0 : i32
    return %arg0, %c0_i32 : i32, i32
  }
  func.func @transform_1(%arg0: i32) -> (i32, i32) {
    %c0_i32 = arith.constant 0 : i32
    %c0_i32_0 = arith.constant 0 : i32
    %c0_i32_1 = arith.constant 0 : i32
    return %c0_i32, %c0_i32_0 : i32, i32
  }
  func.func @transform_2(%arg0: i32) -> (i32, i32) {
    %c0_i32 = arith.constant 0 : i32
    %c0_i32_0 = arith.constant 0 : i32
    %c0_i32_1 = arith.constant 0 : i32
    return %c0_i32, %c0_i32_0 : i32, i32
  }
  func.func @transform_3(%arg0: i32) -> (i32, i32) {
    %c0_i32 = arith.constant 0 : i32
    %c0_i32_0 = arith.constant 0 : i32
    %c0_i32_1 = arith.constant 0 : i32
    return %c0_i32, %c0_i32_0 : i32, i32
  }
  func.func @transform_4(%arg0: i32) -> (i32, i32) {
    %c0_i32 = arith.constant 0 : i32
    %c0_i32_0 = arith.constant 0 : i32
    %c0_i32_1 = arith.constant 0 : i32
    return %c0_i32, %c0_i32_0 : i32, i32
  }
  func.func @transform_5(%arg0: i32) -> (i32, i32) {
    %c0_i32 = arith.constant 0 : i32
    %c0_i32_0 = arith.constant 0 : i32
    %c0_i32_1 = arith.constant 0 : i32
    return %c0_i32, %c0_i32_0 : i32, i32
  }
  func.func @transform_6(%arg0: i32) -> (i32, i32) {
    %c0_i32 = arith.constant 0 : i32
    %c0_i32_0 = arith.constant 0 : i32
    %c0_i32_1 = arith.constant 0 : i32
    return %c0_i32, %c0_i32_0 : i32, i32
  }
  func.func @transform_7(%arg0: i32) -> (i32, i32) {
    %c0_i32 = arith.constant 0 : i32
    %c0_i32_0 = arith.constant 0 : i32
    %c0_i32_1 = arith.constant 0 : i32
    return %c0_i32, %c0_i32_0 : i32, i32
  }
  func.func @transform_8(%arg0: i32) -> (i32, i32) {
    %c0_i32 = arith.constant 0 : i32
    %c0_i32_0 = arith.constant 0 : i32
    return %arg0, %c0_i32 : i32, i32
  }
}

</mosaic_0001>

<llo_original>
// kernel: tpu_custom_call.1
$region0: #{tpu_custom_call.1}
  #allocation0 [shape = 'u32[]', space=smem, size = 0x4, offset = 0x4, fixed_abs, tag = 'smem constant byte address 0x4 - core index']
  #allocation1 [shape = 'u32[144,128]{1,0:T(1,128)}', space=vmem, size = 0x12000, scoped, tag = 'internal scratch']
  %s0 = inlined_call_operand.hbm [shape: bf16[8,784], index: 0, kind: input, shape index: {}]
  %s1 = inlined_call_operand.hbm [shape: bf16[784,128], index: 1, kind: input, shape index: {}]
  %s2 = inlined_call_operand.vmem [shape: f32[1,128], index: 2, kind: input, shape index: {}]
  %s3 = inlined_call_operand.hbm [shape: bf16[128,128], index: 3, kind: input, shape index: {}]
  %s4 = inlined_call_operand.hbm [shape: bf16[128,128], index: 4, kind: input, shape index: {}]
  %s5 = inlined_call_operand.vmem [shape: f32[1,128], index: 5, kind: input, shape index: {}]
  %s6 = inlined_call_operand.hbm [shape: bf16[128,128], index: 6, kind: input, shape index: {}]
  %s7 = inlined_call_operand.vmem [shape: f32[1,128], index: 7, kind: input, shape index: {}]
  %s8 = inlined_call_operand.hbm [shape: f32[8,128], index: 8, kind: output, shape index: {}]
  %s9 = sld [smem:[#allocation0]]
  $region62: #{tpu_custom_call.1} parent=0
    _
  %s11 = ssub.s32 1, %s9
  %s12 = scalar_select 0, %s11, %s9
  $region1: #{tpu_custom_call.1} parent=0
    #allocation2 [shape = 'u8[14336]{0}', space=vmem, size = 0x3800, scoped, tag = 'input window, operand 0, single buffered']
    #allocation3 [shape = 's32[1]{0}', space=sflag, size = 0x4, scoped, tag = 'scoped memory for tpu_custom_call.1']
    #allocation4 [shape = 's32[1]{0}', space=sflag, size = 0x4, scoped, tag = 'scoped memory for tpu_custom_call.1']
    #allocation5 [shape = 'u8[200704]{0}', space=vmem, size = 0x31000, scoped, tag = 'input window, operand 1, single buffered']
    #allocation6 [shape = 's32[1]{0}', space=sflag, size = 0x4, scoped, tag = 'scoped memory for tpu_custom_call.1']
    #allocation7 [shape = 'u8[32768]{0}', space=vmem, size = 0x8000, scoped, tag = 'input window, operand 3, single buffered']
    #allocation8 [shape = 'u8[32768]{0}', space=vmem, size = 0x8000, scoped, tag = 'input window, operand 4, single buffered']
    #allocation9 [shape = 's32[1]{0}', space=sflag, size = 0x4, scoped, tag = 'scoped memory for tpu_custom_call.1']
    #allocation10 [shape = 'u8[32768]{0}', space=vmem, size = 0x8000, scoped, tag = 'input window, operand 6, single buffered']
    #allocation11 [shape = 'u8[4096]{0}', space=vmem, size = 0x1000, scoped, tag = 'output window, operand 0, single buffered']
    %13 = vsyncpa [#allocation3], 0
    %14 = vsyncpa [#allocation6], 0
    %15 = vsyncpa [#allocation9], 0
    %16 = vsyncpa [#allocation4], 0
    // Predicated region
    $region2: #{tpu_custom_call.1} parent=1 // pred_check
      _
    $region3: #{tpu_custom_call.1} parent=1 // pred_check_branch
      %18 = sbr.rel (0) target = $region5
    $region4: #{tpu_custom_call.1} parent=1 // pred_region
      %s20 = ssub.s32 448, 448
      %21 = vsyncadd [#allocation3], %s20
      %s23 = sshll.u32 [#allocation2], 4
      %s24 = int_to_ptr.vmem [resolvable:$true] %s23
      %26 = dma.hbm_to_vmem [thread:$0]  %s0, 448, %s24, [#allocation3]
    $region5: #{tpu_custom_call.1} parent=1 // pred_fallthru
      _
    // Predicated region
    $region6: #{tpu_custom_call.1} parent=1 // pred_check
      _
    $region7: #{tpu_custom_call.1} parent=1 // pred_check_branch
      %28 = sbr.rel (0) target = $region9
    $region8: #{tpu_custom_call.1} parent=1 // pred_region
      %s30 = ssub.s32 6272, 6272
      %31 = vsyncadd [#allocation6], %s30
      %s32 = sshll.u32 [#allocation5], 4
      %s33 = int_to_ptr.vmem [resolvable:$true] %s32
      %38 = dma.hbm_to_vmem [thread:$0]  %s1, 6272, %s33, [#allocation6], 64, 64, 4
    $region9: #{tpu_custom_call.1} parent=1 // pred_fallthru
      _
    // Predicated region
    $region10: #{tpu_custom_call.1} parent=1 // pred_check
      _
    $region11: #{tpu_custom_call.1} parent=1 // pred_check_branch
      %40 = sbr.rel (0) target = $region13
    $region12: #{tpu_custom_call.1} parent=1 // pred_region
      _
    $region13: #{tpu_custom_call.1} parent=1 // pred_fallthru
      _
    // Predicated region
    $region14: #{tpu_custom_call.1} parent=1 // pred_check
      _
    $region15: #{tpu_custom_call.1} parent=1 // pred_check_branch
      %42 = sbr.rel (0) target = $region17
    $region16: #{tpu_custom_call.1} parent=1 // pred_region
      %s44 = ssub.s32 1024, 1024
      %45 = vsyncadd [#allocation6], %s44
      %s46 = sshll.u32 [#allocation7], 4
      %s47 = int_to_ptr.vmem [resolvable:$true] %s46
      %52 = dma.hbm_to_vmem [thread:$0]  %s3, 1024, %s47, [#allocation6], 64, 64, 4
    $region17: #{tpu_custom_call.1} parent=1 // pred_fallthru
      _
    // Predicated region
    $region18: #{tpu_custom_call.1} parent=1 // pred_check
      _
    $region19: #{tpu_custom_call.1} parent=1 // pred_check_branch
      %54 = sbr.rel (0) target = $region21
    $region20: #{tpu_custom_call.1} parent=1 // pred_region
      %s56 = ssub.s32 1024, 1024
      %57 = vsyncadd [#allocation9], %s56
      %s58 = sshll.u32 [#allocation8], 4
      %s59 = int_to_ptr.vmem [resolvable:$true] %s58
      %64 = dma.hbm_to_vmem [thread:$0]  %s4, 1024, %s59, [#allocation9], 64, 64, 4
    $region21: #{tpu_custom_call.1} parent=1 // pred_fallthru
      _
    // Predicated region
    $region22: #{tpu_custom_call.1} parent=1 // pred_check
      _
    $region23: #{tpu_custom_call.1} parent=1 // pred_check_branch
      %66 = sbr.rel (0) target = $region25
    $region24: #{tpu_custom_call.1} parent=1 // pred_region
      _
    $region25: #{tpu_custom_call.1} parent=1 // pred_fallthru
      _
    // Predicated region
    $region26: #{tpu_custom_call.1} parent=1 // pred_check
      _
    $region27: #{tpu_custom_call.1} parent=1 // pred_check_branch
      %68 = sbr.rel (0) target = $region29
    $region28: #{tpu_custom_call.1} parent=1 // pred_region
      %s70 = ssub.s32 1024, 1024
      %71 = vsyncadd [#allocation9], %s70
      %s72 = sshll.u32 [#allocation10], 4
      %s73 = int_to_ptr.vmem [resolvable:$true] %s72
      %78 = dma.hbm_to_vmem [thread:$0]  %s6, 1024, %s73, [#allocation9], 64, 64, 4
    $region29: #{tpu_custom_call.1} parent=1 // pred_fallthru
      _
    // Predicated region
    $region30: #{tpu_custom_call.1} parent=1 // pred_check
      _
    $region31: #{tpu_custom_call.1} parent=1 // pred_check_branch
      %80 = sbr.rel (0) target = $region33
    $region32: #{tpu_custom_call.1} parent=1 // pred_region
      _
    $region33: #{tpu_custom_call.1} parent=1 // pred_fallthru
      _
    // Predicated region
    $region34: #{tpu_custom_call.1} parent=1 // pred_check
      _
    $region35: #{tpu_custom_call.1} parent=1 // pred_check_branch
      %82 = sbr.rel (0) target = $region37
    $region36: #{tpu_custom_call.1} parent=1 // pred_region
      %83 = dma.done [#allocation3], 448
    $region37: #{tpu_custom_call.1} parent=1 // pred_fallthru
      _
    // Predicated region
    $region38: #{tpu_custom_call.1} parent=1 // pred_check
      _
    $region39: #{tpu_custom_call.1} parent=1 // pred_check_branch
      %85 = sbr.rel (0) target = $region41
    $region40: #{tpu_custom_call.1} parent=1 // pred_region
      %86 = dma.done [#allocation6], 6272
    $region41: #{tpu_custom_call.1} parent=1 // pred_fallthru
      _
    // Predicated region
    $region42: #{tpu_custom_call.1} parent=1 // pred_check
      _
    $region43: #{tpu_custom_call.1} parent=1 // pred_check_branch
      %88 = sbr.rel (0) target = $region45
    $region44: #{tpu_custom_call.1} parent=1 // pred_region
      %89 = dma.done [#allocation6], 1024
    $region45: #{tpu_custom_call.1} parent=1 // pred_fallthru
      _
    // Predicated region
    $region46: #{tpu_custom_call.1} parent=1 // pred_check
      _
    $region47: #{tpu_custom_call.1} parent=1 // pred_check_branch
      %91 = sbr.rel (0) target = $region49
    $region48: #{tpu_custom_call.1} parent=1 // pred_region
      %92 = dma.done [#allocation9], 1024
    $region49: #{tpu_custom_call.1} parent=1 // pred_fallthru
      _
    // Predicated region
    $region50: #{tpu_custom_call.1} parent=1 // pred_check
      _
    $region51: #{tpu_custom_call.1} parent=1 // pred_check_branch
      %94 = sbr.rel (0) target = $region53
    $region52: #{tpu_custom_call.1} parent=1 // pred_region
      %95 = dma.done [#allocation9], 1024
    $region53: #{tpu_custom_call.1} parent=1 // pred_fallthru
      _
    %v97 = vld [vmem:[#allocation2] sm:$0xff]
    %v98 = vld [vmem:[#allocation2 + $0x8] sm:$0xff]
    %v99 = vld [vmem:[#allocation2 + $0x10] sm:$0xff]
    %v100 = vld [vmem:[#allocation2 + $0x18] sm:$0xf]
    %v101 = vld [vmem:[#allocation5] sm:$0xf]
    %v102 = vld [vmem:[#allocation5 + $0x4] sm:$0xf]
    %v103 = vld [vmem:[#allocation5 + $0x8] sm:$0xf]
    %v104 = vld [vmem:[#allocation5 + $0xc] sm:$0xf]
    %v105 = vld [vmem:[#allocation5 + $0x10] sm:$0xf]
    %v106 = vld [vmem:[#allocation5 + $0x14] sm:$0xf]
    %v107 = vld [vmem:[#allocation5 + $0x18] sm:$0xf]
    %v108 = vld [vmem:[#allocation5 + $0x1c] sm:$0xf]
    %v109 = vld [vmem:[#allocation5 + $0x20] sm:$0xf]
    %v110 = vld [vmem:[#allocation5 + $0x24] sm:$0xf]
    %v111 = vld [vmem:[#allocation5 + $0x28] sm:$0xf]
    %v112 = vld [vmem:[#allocation5 + $0x2c] sm:$0xf]
    %v113 = vld [vmem:[#allocation5 + $0x30] sm:$0xf]
    %v114 = vld [vmem:[#allocation5 + $0x34] sm:$0xf]
    %v115 = vld [vmem:[#allocation5 + $0x38] sm:$0xf]
    %v116 = vld [vmem:[#allocation5 + $0x3c] sm:$0xf]
    %v117 = vld [vmem:[#allocation5 + $0x40] sm:$0xf]
    %v118 = vld [vmem:[#allocation5 + $0x44] sm:$0xf]
    %v119 = vld [vmem:[#allocation5 + $0x48] sm:$0xf]
    %v120 = vld [vmem:[#allocation5 + $0x4c] sm:$0xf]
    %v121 = vld [vmem:[#allocation5 + $0x50] sm:$0xf]
    %v122 = vld [vmem:[#allocation5 + $0x54] sm:$0xf]
    %v123 = vld [vmem:[#allocation5 + $0x58] sm:$0xf]
    %v124 = vld [vmem:[#allocation5 + $0x5c] sm:$0xf]
    %v125 = vld [vmem:[#allocation5 + $0x60] sm:$0xf]
    %v126 = vld [vmem:[#allocation5 + $0x64] sm:$0xf]
    %v127 = vld [vmem:[#allocation5 + $0x68] sm:$0xf]
    %v128 = vld [vmem:[#allocation5 + $0x6c] sm:$0xf]
    %v129 = vld [vmem:[#allocation5 + $0x70] sm:$0xf]
    %v130 = vld [vmem:[#allocation5 + $0x74] sm:$0xf]
    %v131 = vld [vmem:[#allocation5 + $0x78] sm:$0xf]
    %v132 = vld [vmem:[#allocation5 + $0x7c] sm:$0xf]
    %v133 = vld [vmem:[#allocation5 + $0x80] sm:$0xf]
    %v134 = vld [vmem:[#allocation5 + $0x84] sm:$0xf]
    %v135 = vld [vmem:[#allocation5 + $0x88] sm:$0xf]
    %v136 = vld [vmem:[#allocation5 + $0x8c] sm:$0xf]
    %v137 = vld [vmem:[#allocation5 + $0x90] sm:$0xf]
    %v138 = vld [vmem:[#allocation5 + $0x94] sm:$0xf]
    %v139 = vld [vmem:[#allocation5 + $0x98] sm:$0xf]
    %v140 = vld [vmem:[#allocation5 + $0x9c] sm:$0xf]
    %v141 = vld [vmem:[#allocation5 + $0xa0] sm:$0xf]
    %v142 = vld [vmem:[#allocation5 + $0xa4] sm:$0xf]
    %v143 = vld [vmem:[#allocation5 + $0xa8] sm:$0xf]
    %v144 = vld [vmem:[#allocation5 + $0xac] sm:$0xf]
    %v145 = vld [vmem:[#allocation5 + $0xb0] sm:$0xf]
    %v146 = vld [vmem:[#allocation5 + $0xb4] sm:$0xf]
    %v147 = vld [vmem:[#allocation5 + $0xb8] sm:$0xf]
    %v148 = vld [vmem:[#allocation5 + $0xbc] sm:$0xf]
    %v149 = vld [vmem:[#allocation5 + $0xc0] sm:$0xf]
    %v150 = vld [vmem:[#allocation5 + $0xc4] sm:$0xf]
    %v151 = vld [vmem:[#allocation5 + $0xc8] sm:$0xf]
    %v152 = vld [vmem:[#allocation5 + $0xcc] sm:$0xf]
    %v153 = vld [vmem:[#allocation5 + $0xd0] sm:$0xf]
    %v154 = vld [vmem:[#allocation5 + $0xd4] sm:$0xf]
    %v155 = vld [vmem:[#allocation5 + $0xd8] sm:$0xf]
    %v156 = vld [vmem:[#allocation5 + $0xdc] sm:$0xf]
    %v157 = vld [vmem:[#allocation5 + $0xe0] sm:$0xf]
    %v158 = vld [vmem:[#allocation5 + $0xe4] sm:$0xf]
    %v159 = vld [vmem:[#allocation5 + $0xe8] sm:$0xf]
    %v160 = vld [vmem:[#allocation5 + $0xec] sm:$0xf]
    %v161 = vld [vmem:[#allocation5 + $0xf0] sm:$0xf]
    %v162 = vld [vmem:[#allocation5 + $0xf4] sm:$0xf]
    %v163 = vld [vmem:[#allocation5 + $0xf8] sm:$0xf]
    %v164 = vld [vmem:[#allocation5 + $0xfc] sm:$0xf]
    %v165 = vld [vmem:[#allocation5 + $0x100] sm:$0xf]
    %v166 = vld [vmem:[#allocation5 + $0x104] sm:$0xf]
    %v167 = vld [vmem:[#allocation5 + $0x108] sm:$0xf]
    %v168 = vld [vmem:[#allocation5 + $0x10c] sm:$0xf]
    %v169 = vld [vmem:[#allocation5 + $0x110] sm:$0xf]
    %v170 = vld [vmem:[#allocation5 + $0x114] sm:$0xf]
    %v171 = vld [vmem:[#allocation5 + $0x118] sm:$0xf]
    %v172 = vld [vmem:[#allocation5 + $0x11c] sm:$0xf]
    %v173 = vld [vmem:[#allocation5 + $0x120] sm:$0xf]
    %v174 = vld [vmem:[#allocation5 + $0x124] sm:$0xf]
    %v175 = vld [vmem:[#allocation5 + $0x128] sm:$0xf]
    %v176 = vld [vmem:[#allocation5 + $0x12c] sm:$0xf]
    %v177 = vld [vmem:[#allocation5 + $0x130] sm:$0xf]
    %v178 = vld [vmem:[#allocation5 + $0x134] sm:$0xf]
    %v179 = vld [vmem:[#allocation5 + $0x138] sm:$0xf]
    %v180 = vld [vmem:[#allocation5 + $0x13c] sm:$0xf]
    %v181 = vld [vmem:[#allocation5 + $0x140] sm:$0xf]
    %v182 = vld [vmem:[#allocation5 + $0x144] sm:$0xf]
    %v183 = vld [vmem:[#allocation5 + $0x148] sm:$0xf]
    %v184 = vld [vmem:[#allocation5 + $0x14c] sm:$0xf]
    %v185 = vld [vmem:[#allocation5 + $0x150] sm:$0xf]
    %v186 = vld [vmem:[#allocation5 + $0x154] sm:$0xf]
    %v187 = vld [vmem:[#allocation5 + $0x158] sm:$0xf]
    %v188 = vld [vmem:[#allocation5 + $0x15c] sm:$0xf]
    %v189 = vld [vmem:[#allocation5 + $0x160] sm:$0xf]
    %v190 = vld [vmem:[#allocation5 + $0x164] sm:$0xf]
    %v191 = vld [vmem:[#allocation5 + $0x168] sm:$0xf]
    %v192 = vld [vmem:[#allocation5 + $0x16c] sm:$0xf]
    %v193 = vld [vmem:[#allocation5 + $0x170] sm:$0xf]
    %v194 = vld [vmem:[#allocation5 + $0x174] sm:$0xf]
    %v195 = vld [vmem:[#allocation5 + $0x178] sm:$0xf]
    %v196 = vld [vmem:[#allocation5 + $0x17c] sm:$0xf]
    %v197 = vld [vmem:[#allocation5 + $0x180] sm:$0xf]
    %v198 = vld [vmem:[#allocation5 + $0x184] sm:$0xf]
    %v199 = vld [vmem:[%s2] sm:$0x1]
    %v201 = vlaneseq
    %v202 = vshrl.u32 %v201, 7
    %v203 = vsub.s32 0, %v202
    %v204 = vrot.slane %v199, %v203
    %v210 = vunpack.c.l.b16 %v97
    %v211 = vunpack.c.h.b16 %v97
    %v212 = vunpack.c.l.b16 %v98
    %v213 = vunpack.c.h.b16 %v98
    %v214 = vunpack.c.l.b16 %v99
    %v215 = vunpack.c.h.b16 %v99
    %v216 = vunpack.c.l.b16 %v100
    %v217 = vpack.c.b16 %v210, %v210
    %v218 = vpack.c.b16 %v211, %v211
    %v219 = vpack.c.b16 %v212, %v212
    %v220 = vpack.c.b16 %v213, %v213
    %v221 = vpack.c.b16 %v214, %v214
    %v222 = vpack.c.b16 %v215, %v215
    %v223 = vpack.c.b16 %v216, %v216
    %v328 = vunpack.c.l.b16 %v101
    %v329 = vunpack.c.l.b16 %v102
    %v330 = vunpack.c.l.b16 %v103
    %v331 = vunpack.c.l.b16 %v104
    %v332 = vunpack.c.l.b16 %v105
    %v333 = vunpack.c.l.b16 %v106
    %v334 = vunpack.c.l.b16 %v107
    %v335 = vunpack.c.l.b16 %v108
    %v336 = vunpack.c.l.b16 %v109
    %v337 = vunpack.c.l.b16 %v110
    %v338 = vunpack.c.l.b16 %v111
    %v339 = vunpack.c.l.b16 %v112
    %v340 = vunpack.c.l.b16 %v113
    %v341 = vunpack.c.l.b16 %v114
    %v342 = vunpack.c.l.b16 %v115
    %v343 = vunpack.c.l.b16 %v116
    %v344 = vunpack.c.l.b16 %v117
    %v345 = vunpack.c.l.b16 %v118
    %v346 = vunpack.c.l.b16 %v119
    %v347 = vunpack.c.l.b16 %v120
    %v348 = vunpack.c.l.b16 %v121
    %v349 = vunpack.c.l.b16 %v122
    %v350 = vunpack.c.l.b16 %v123
    %v351 = vunpack.c.l.b16 %v124
    %v352 = vunpack.c.l.b16 %v125
    %v353 = vunpack.c.l.b16 %v126
    %v354 = vunpack.c.l.b16 %v127
    %v355 = vunpack.c.l.b16 %v128
    %v356 = vunpack.c.l.b16 %v129
    %v357 = vunpack.c.l.b16 %v130
    %v358 = vunpack.c.l.b16 %v131
    %v359 = vunpack.c.l.b16 %v132
    %v360 = vunpack.c.l.b16 %v133
    %v361 = vunpack.c.l.b16 %v134
    %v362 = vunpack.c.l.b16 %v135
    %v363 = vunpack.c.l.b16 %v136
    %v364 = vunpack.c.l.b16 %v137
    %v365 = vunpack.c.l.b16 %v138
    %v366 = vunpack.c.l.b16 %v139
    %v367 = vunpack.c.l.b16 %v140
    %v368 = vunpack.c.l.b16 %v141
    %v369 = vunpack.c.l.b16 %v142
    %v370 = vunpack.c.l.b16 %v143
    %v371 = vunpack.c.l.b16 %v144
    %v372 = vunpack.c.l.b16 %v145
    %v373 = vunpack.c.l.b16 %v146
    %v374 = vunpack.c.l.b16 %v147
    %v375 = vunpack.c.l.b16 %v148
    %v376 = vunpack.c.l.b16 %v149
    %v377 = vunpack.c.l.b16 %v150
    %v378 = vunpack.c.l.b16 %v151
    %v379 = vunpack.c.l.b16 %v152
    %v380 = vunpack.c.l.b16 %v153
    %v381 = vunpack.c.l.b16 %v154
    %v382 = vunpack.c.l.b16 %v155
    %v383 = vunpack.c.l.b16 %v156
    %v384 = vunpack.c.l.b16 %v157
    %v385 = vunpack.c.l.b16 %v158
    %v386 = vunpack.c.l.b16 %v159
    %v387 = vunpack.c.l.b16 %v160
    %v388 = vunpack.c.l.b16 %v161
    %v389 = vunpack.c.l.b16 %v162
    %v390 = vunpack.c.l.b16 %v163
    %v391 = vunpack.c.l.b16 %v164
    %v392 = vunpack.c.l.b16 %v165
    %v393 = vunpack.c.l.b16 %v166
    %v394 = vunpack.c.l.b16 %v167
    %v395 = vunpack.c.l.b16 %v168
    %v396 = vunpack.c.l.b16 %v169
    %v397 = vunpack.c.l.b16 %v170
    %v398 = vunpack.c.l.b16 %v171
    %v399 = vunpack.c.l.b16 %v172
    %v400 = vunpack.c.l.b16 %v173
    %v401 = vunpack.c.l.b16 %v174
    %v402 = vunpack.c.l.b16 %v175
    %v403 = vunpack.c.l.b16 %v176
    %v404 = vunpack.c.l.b16 %v177
    %v405 = vunpack.c.l.b16 %v178
    %v406 = vunpack.c.l.b16 %v179
    %v407 = vunpack.c.l.b16 %v180
    %v408 = vunpack.c.l.b16 %v181
    %v409 = vunpack.c.l.b16 %v182
    %v410 = vunpack.c.l.b16 %v183
    %v411 = vunpack.c.l.b16 %v184
    %v412 = vunpack.c.l.b16 %v185
    %v413 = vunpack.c.l.b16 %v186
    %v414 = vunpack.c.l.b16 %v187
    %v415 = vunpack.c.l.b16 %v188
    %v416 = vunpack.c.l.b16 %v189
    %v417 = vunpack.c.l.b16 %v190
    %v418 = vunpack.c.l.b16 %v191
    %v419 = vunpack.c.l.b16 %v192
    %v420 = vunpack.c.l.b16 %v193
    %v421 = vunpack.c.l.b16 %v194
    %v422 = vunpack.c.l.b16 %v195
    %v423 = vunpack.c.l.b16 %v196
    %v424 = vunpack.c.l.b16 %v197
    %v425 = vunpack.c.l.b16 %v198
    %v426 = vpack.c.b16 %v329, %v328
    %v427 = vpack.c.b16 %v331, %v330
    %v428 = vpack.c.b16 %v333, %v332
    %v429 = vpack.c.b16 %v335, %v334
    %v430 = vpack.c.b16 %v337, %v336
    %v431 = vpack.c.b16 %v339, %v338
    %v432 = vpack.c.b16 %v341, %v340
    %v433 = vpack.c.b16 %v343, %v342
    %v434 = vpack.c.b16 %v345, %v344
    %v435 = vpack.c.b16 %v347, %v346
    %v436 = vpack.c.b16 %v349, %v348
    %v437 = vpack.c.b16 %v351, %v350
    %v438 = vpack.c.b16 %v353, %v352
    %v439 = vpack.c.b16 %v355, %v354
    %v440 = vpack.c.b16 %v357, %v356
    %v441 = vpack.c.b16 %v359, %v358
    %v442 = vpack.c.b16 %v361, %v360
    %v443 = vpack.c.b16 %v363, %v362
    %v444 = vpack.c.b16 %v365, %v364
    %v445 = vpack.c.b16 %v367, %v366
    %v446 = vpack.c.b16 %v369, %v368
    %v447 = vpack.c.b16 %v371, %v370
    %v448 = vpack.c.b16 %v373, %v372
    %v449 = vpack.c.b16 %v375, %v374
    %v450 = vpack.c.b16 %v377, %v376
    %v451 = vpack.c.b16 %v379, %v378
    %v452 = vpack.c.b16 %v381, %v380
    %v453 = vpack.c.b16 %v383, %v382
    %v454 = vpack.c.b16 %v385, %v384
    %v455 = vpack.c.b16 %v387, %v386
    %v456 = vpack.c.b16 %v389, %v388
    %v457 = vpack.c.b16 %v391, %v390
    %v458 = vpack.c.b16 %v393, %v392
    %v459 = vpack.c.b16 %v395, %v394
    %v460 = vpack.c.b16 %v397, %v396
    %v461 = vpack.c.b16 %v399, %v398
    %v462 = vpack.c.b16 %v401, %v400
    %v463 = vpack.c.b16 %v403, %v402
    %v464 = vpack.c.b16 %v405, %v404
    %v465 = vpack.c.b16 %v407, %v406
    %v466 = vpack.c.b16 %v409, %v408
    %v467 = vpack.c.b16 %v411, %v410
    %v468 = vpack.c.b16 %v413, %v412
    %v469 = vpack.c.b16 %v415, %v414
    %v470 = vpack.c.b16 %v417, %v416
    %v471 = vpack.c.b16 %v419, %v418
    %v472 = vpack.c.b16 %v421, %v420
    %v473 = vpack.c.b16 %v423, %v422
    %v474 = vpack.c.b16 %v425, %v424
    %vm524 = vcmask 130048
    %v526 = vsel %vm524, %v223, 0
    %528 = vmatprep.subr.bf16.mxu0 0
    %529 = vmatpush1.bf16.msra.mxu0 %v426
    %530 = vmatprep.subr.bf16.mxu0 0
    %531 = vmatpush1.bf16.msra.mxu0 %v427
    %532 = vmatprep.subr.bf16.mxu0 0
    %533 = vmatpush1.bf16.msra.mxu0 %v428
    %534 = vmatprep.subr.bf16.mxu0 0
    %535 = vmatpush1.bf16.msra.mxu0 %v429
    %536 = vmatprep.subr.bf16.mxu0 0
    %537 = vmatpush1.bf16.msra.mxu0 %v430
    %538 = vmatprep.subr.bf16.mxu0 0
    %539 = vmatpush1.bf16.msra.mxu0 %v431
    %540 = vmatprep.subr.bf16.mxu0 0
    %541 = vmatpush1.bf16.msra.mxu0 %v432
    %542 = vmatprep.subr.bf16.mxu0 0
    %543 = vmatpush1.bf16.msra.mxu0 %v433
    %544 = vmatprep.subr.bf16.mxu0 0
    %545 = vmatpush1.bf16.msra.mxu0 %v434
    %546 = vmatprep.subr.bf16.mxu0 0
    %547 = vmatpush1.bf16.msra.mxu0 %v435
    %548 = vmatprep.subr.bf16.mxu0 0
    %549 = vmatpush1.bf16.msra.mxu0 %v436
    %550 = vmatprep.subr.bf16.mxu0 0
    %551 = vmatpush1.bf16.msra.mxu0 %v437
    %552 = vmatprep.subr.bf16.mxu0 0
    %553 = vmatpush1.bf16.msra.mxu0 %v438
    %554 = vmatprep.subr.bf16.mxu0 0
    %555 = vmatpush1.bf16.msra.mxu0 %v439
    %556 = vmatprep.subr.bf16.mxu0 0
    %557 = vmatpush1.bf16.msra.mxu0 %v440
    %558 = vmatprep.subr.bf16.mxu0 0
    %559 = vmatpush1.bf16.msra.mxu0 %v441
    %560 = vmatprep.mubr.bf16.mxu0 %v218
    %561 = vmatmul.mubr.bf16.gmra.mrb[0].mxu0 %v217
    %v562 = vpop.f32.mrb[0].mxu0
    %v563 = vadd.f32 %v204, %v562
    %v564 = vpop.f32.mrb[0].mxu0
    %v565 = vpop.f32.mrb[0].mxu0
    %v566 = vpop.f32.mrb[0].mxu0
    %567 = vdwg.mxu0
    %568 = vmatprep.subr.bf16.mxu0 0
    %569 = vmatpush1.bf16.msra.mxu0 %v442
    %570 = vmatprep.subr.bf16.mxu0 0
    %571 = vmatpush1.bf16.msra.mxu0 %v443
    %572 = vmatprep.subr.bf16.mxu0 0
    %573 = vmatpush1.bf16.msra.mxu0 %v444
    %574 = vmatprep.subr.bf16.mxu0 0
    %575 = vmatpush1.bf16.msra.mxu0 %v445
    %576 = vmatprep.subr.bf16.mxu0 0
    %577 = vmatpush1.bf16.msra.mxu0 %v446
    %578 = vmatprep.subr.bf16.mxu0 0
    %579 = vmatpush1.bf16.msra.mxu0 %v447
    %580 = vmatprep.subr.bf16.mxu0 0
    %581 = vmatpush1.bf16.msra.mxu0 %v448
    %582 = vmatprep.subr.bf16.mxu0 0
    %583 = vmatpush1.bf16.msra.mxu0 %v449
    %584 = vmatprep.subr.bf16.mxu0 0
    %585 = vmatpush1.bf16.msra.mxu0 %v450
    %586 = vmatprep.subr.bf16.mxu0 0
    %587 = vmatpush1.bf16.msra.mxu0 %v451
    %588 = vmatprep.subr.bf16.mxu0 0
    %589 = vmatpush1.bf16.msra.mxu0 %v452
    %590 = vmatprep.subr.bf16.mxu0 0
    %591 = vmatpush1.bf16.msra.mxu0 %v453
    %592 = vmatprep.subr.bf16.mxu0 0
    %593 = vmatpush1.bf16.msra.mxu0 %v454
    %594 = vmatprep.subr.bf16.mxu0 0
    %595 = vmatpush1.bf16.msra.mxu0 %v455
    %596 = vmatprep.subr.bf16.mxu0 0
    %597 = vmatpush1.bf16.msra.mxu0 %v456
    %598 = vmatprep.subr.bf16.mxu0 0
    %599 = vmatpush1.bf16.msra.mxu0 %v457
    %600 = vmatprep.mubr.bf16.mxu0 %v220
    %601 = vmatmul.mubr.bf16.gmra.mrb[0].mxu0 %v219
    %v602 = vpop.f32.mrb[0].mxu0
    %v603 = vadd.f32 %v563, %v602
    %v604 = vpop.f32.mrb[0].mxu0
    %v605 = vpop.f32.mrb[0].mxu0
    %v606 = vpop.f32.mrb[0].mxu0
    %607 = vdwg.mxu0
    %608 = vmatprep.subr.bf16.mxu0 0
    %609 = vmatpush1.bf16.msra.mxu0 %v458
    %610 = vmatprep.subr.bf16.mxu0 0
    %611 = vmatpush1.bf16.msra.mxu0 %v459
    %612 = vmatprep.subr.bf16.mxu0 0
    %613 = vmatpush1.bf16.msra.mxu0 %v460
    %614 = vmatprep.subr.bf16.mxu0 0
    %615 = vmatpush1.bf16.msra.mxu0 %v461
    %616 = vmatprep.subr.bf16.mxu0 0
    %617 = vmatpush1.bf16.msra.mxu0 %v462
    %618 = vmatprep.subr.bf16.mxu0 0
    %619 = vmatpush1.bf16.msra.mxu0 %v463
    %620 = vmatprep.subr.bf16.mxu0 0
    %621 = vmatpush1.bf16.msra.mxu0 %v464
    %622 = vmatprep.subr.bf16.mxu0 0
    %623 = vmatpush1.bf16.msra.mxu0 %v465
    %624 = vmatprep.subr.bf16.mxu0 0
    %625 = vmatpush1.bf16.msra.mxu0 %v466
    %626 = vmatprep.subr.bf16.mxu0 0
    %627 = vmatpush1.bf16.msra.mxu0 %v467
    %628 = vmatprep.subr.bf16.mxu0 0
    %629 = vmatpush1.bf16.msra.mxu0 %v468
    %630 = vmatprep.subr.bf16.mxu0 0
    %631 = vmatpush1.bf16.msra.mxu0 %v469
    %632 = vmatprep.subr.bf16.mxu0 0
    %633 = vmatpush1.bf16.msra.mxu0 %v470
    %634 = vmatprep.subr.bf16.mxu0 0
    %635 = vmatpush1.bf16.msra.mxu0 %v471
    %636 = vmatprep.subr.bf16.mxu0 0
    %637 = vmatpush1.bf16.msra.mxu0 %v472
    %638 = vmatprep.subr.bf16.mxu0 0
    %639 = vmatpush1.bf16.msra.mxu0 %v473
    %640 = vmatprep.mubr.bf16.mxu0 %v222
    %641 = vmatmul.mubr.bf16.gmra.mrb[0].mxu0 %v221
    %v642 = vpop.f32.mrb[0].mxu0
    %v643 = vadd.f32 %v603, %v642
    %v644 = vpop.f32.mrb[0].mxu0
    %v645 = vpop.f32.mrb[0].mxu0
    %v646 = vpop.f32.mrb[0].mxu0
    %647 = vdwg.mxu0
    %648 = vmatprep.subr.bf16.mxu0 0
    %649 = vmatpush1.bf16.msra.mxu0 %v474
    %650 = vmatprep.subr.bf16.mxu0 0
    %651 = vmatpush1.bf16.msra.mxu0 0
    %652 = vmatprep.subr.bf16.mxu0 0
    %653 = vmatpush1.bf16.msra.mxu0 0
    %654 = vmatprep.subr.bf16.mxu0 0
    %655 = vmatpush1.bf16.msra.mxu0 0
    %656 = vmatprep.subr.bf16.mxu0 0
    %657 = vmatpush1.bf16.msra.mxu0 0
    %658 = vmatprep.subr.bf16.mxu0 0
    %659 = vmatpush1.bf16.msra.mxu0 0
    %660 = vmatprep.subr.bf16.mxu0 0
    %661 = vmatpush1.bf16.msra.mxu0 0
    %662 = vmatprep.subr.bf16.mxu0 0
    %663 = vmatpush1.bf16.msra.mxu0 0
    %664 = vmatprep.subr.bf16.mxu0 0
    %665 = vmatpush1.bf16.msra.mxu0 0
    %666 = vmatprep.subr.bf16.mxu0 0
    %667 = vmatpush1.bf16.msra.mxu0 0
    %668 = vmatprep.subr.bf16.mxu0 0
    %669 = vmatpush1.bf16.msra.mxu0 0
    %670 = vmatprep.subr.bf16.mxu0 0
    %671 = vmatpush1.bf16.msra.mxu0 0
    %672 = vmatprep.subr.bf16.mxu0 0
    %673 = vmatpush1.bf16.msra.mxu0 0
    %674 = vmatprep.subr.bf16.mxu0 0
    %675 = vmatpush1.bf16.msra.mxu0 0
    %676 = vmatprep.subr.bf16.mxu0 0
    %677 = vmatpush1.bf16.msra.mxu0 0
    %678 = vmatprep.subr.bf16.mxu0 0
    %679 = vmatpush1.bf16.msra.mxu0 0
    %680 = vmatprep.mubr.bf16.mxu0 0
    %681 = vmatmul.mubr.bf16.gmra.mrb[0].mxu0 %v526
    %v682 = vpop.f32.mrb[0].mxu0
    %v683 = vadd.f32 %v643, %v682
    %v684 = vpop.f32.mrb[0].mxu0
    %v685 = vpop.f32.mrb[0].mxu0
    %v686 = vpop.f32.mrb[0].mxu0
    %687 = vdwg.mxu0
    %v688 = vmax.f32 %v683, 0.0
    %v689 = vpack.c.bf16 %v688, %v688
    %v690 = vld [vmem:[#allocation7] sm:$0xf]
    %v691 = vld [vmem:[#allocation7 + $0x4] sm:$0xf]
    %v692 = vld [vmem:[#allocation7 + $0x8] sm:$0xf]
    %v693 = vld [vmem:[#allocation7 + $0xc] sm:$0xf]
    %v694 = vld [vmem:[#allocation7 + $0x10] sm:$0xf]
    %v695 = vld [vmem:[#allocation7 + $0x14] sm:$0xf]
    %v696 = vld [vmem:[#allocation7 + $0x18] sm:$0xf]
    %v697 = vld [vmem:[#allocation7 + $0x1c] sm:$0xf]
    %v698 = vld [vmem:[#allocation7 + $0x20] sm:$0xf]
    %v699 = vld [vmem:[#allocation7 + $0x24] sm:$0xf]
    %v700 = vld [vmem:[#allocation7 + $0x28] sm:$0xf]
    %v701 = vld [vmem:[#allocation7 + $0x2c] sm:$0xf]
    %v702 = vld [vmem:[#allocation7 + $0x30] sm:$0xf]
    %v703 = vld [vmem:[#allocation7 + $0x34] sm:$0xf]
    %v704 = vld [vmem:[#allocation7 + $0x38] sm:$0xf]
    %v705 = vld [vmem:[#allocation7 + $0x3c] sm:$0xf]
    %v722 = vunpack.c.l.b16 %v690
    %v723 = vunpack.c.l.b16 %v691
    %v724 = vunpack.c.l.b16 %v692
    %v725 = vunpack.c.l.b16 %v693
    %v726 = vunpack.c.l.b16 %v694
    %v727 = vunpack.c.l.b16 %v695
    %v728 = vunpack.c.l.b16 %v696
    %v729 = vunpack.c.l.b16 %v697
    %v730 = vunpack.c.l.b16 %v698
    %v731 = vunpack.c.l.b16 %v699
    %v732 = vunpack.c.l.b16 %v700
    %v733 = vunpack.c.l.b16 %v701
    %v734 = vunpack.c.l.b16 %v702
    %v735 = vunpack.c.l.b16 %v703
    %v736 = vunpack.c.l.b16 %v704
    %v737 = vunpack.c.l.b16 %v705
    %v738 = vpack.c.b16 %v723, %v722
    %v739 = vpack.c.b16 %v725, %v724
    %v740 = vpack.c.b16 %v727, %v726
    %v741 = vpack.c.b16 %v729, %v728
    %v742 = vpack.c.b16 %v731, %v730
    %v743 = vpack.c.b16 %v733, %v732
    %v744 = vpack.c.b16 %v735, %v734
    %v745 = vpack.c.b16 %v737, %v736
    %754 = vmatprep.subr.bf16.mxu0 0
    %755 = vmatpush1.bf16.msra.mxu0 %v738
    %756 = vmatprep.subr.bf16.mxu0 0
    %757 = vmatpush1.bf16.msra.mxu0 %v739
    %758 = vmatprep.subr.bf16.mxu0 0
    %759 = vmatpush1.bf16.msra.mxu0 %v740
    %760 = vmatprep.subr.bf16.mxu0 0
    %761 = vmatpush1.bf16.msra.mxu0 %v741
    %762 = vmatprep.subr.bf16.mxu0 0
    %763 = vmatpush1.bf16.msra.mxu0 %v742
    %764 = vmatprep.subr.bf16.mxu0 0
    %765 = vmatpush1.bf16.msra.mxu0 %v743
    %766 = vmatprep.subr.bf16.mxu0 0
    %767 = vmatpush1.bf16.msra.mxu0 %v744
    %768 = vmatprep.subr.bf16.mxu0 0
    %769 = vmatpush1.bf16.msra.mxu0 %v745
    %770 = vmatprep.subr.bf16.mxu0 0
    %771 = vmatpush1.bf16.msra.mxu0 0
    %772 = vmatprep.subr.bf16.mxu0 0
    %773 = vmatpush1.bf16.msra.mxu0 0
    %774 = vmatprep.subr.bf16.mxu0 0
    %775 = vmatpush1.bf16.msra.mxu0 0
    %776 = vmatprep.subr.bf16.mxu0 0
    %777 = vmatpush1.bf16.msra.mxu0 0
    %778 = vmatprep.subr.bf16.mxu0 0
    %779 = vmatpush1.bf16.msra.mxu0 0
    %780 = vmatprep.subr.bf16.mxu0 0
    %781 = vmatpush1.bf16.msra.mxu0 0
    %782 = vmatprep.subr.bf16.mxu0 0
    %783 = vmatpush1.bf16.msra.mxu0 0
    %784 = vmatprep.subr.bf16.mxu0 0
    %785 = vmatpush1.bf16.msra.mxu0 0
    %786 = vmatprep.mubr.bf16.mxu0 0
    %787 = vmatmul.mubr.bf16.gmra.mrb[0].mxu0 %v689
    %v788 = vpop.f32.mrb[0].mxu0
    %v789 = vadd.f32 0.0, %v788
    %v790 = vpop.f32.mrb[0].mxu0
    %v791 = vpop.f32.mrb[0].mxu0
    %v792 = vpop.f32.mrb[0].mxu0
    %793 = vdwg.mxu0
    %v794 = vmax.f32 %v789, 0.0
    %v795 = vpack.c.bf16 %v794, %v794
    %v796 = vld [vmem:[#allocation8] sm:$0xf]
    %v797 = vld [vmem:[#allocation8 + $0x4] sm:$0xf]
    %v798 = vld [vmem:[#allocation8 + $0x8] sm:$0xf]
    %v799 = vld [vmem:[#allocation8 + $0xc] sm:$0xf]
    %v800 = vld [vmem:[#allocation8 + $0x10] sm:$0xf]
    %v801 = vld [vmem:[#allocation8 + $0x14] sm:$0xf]
    %v802 = vld [vmem:[#allocation8 + $0x18] sm:$0xf]
    %v803 = vld [vmem:[#allocation8 + $0x1c] sm:$0xf]
    %v804 = vld [vmem:[#allocation8 + $0x20] sm:$0xf]
    %v805 = vld [vmem:[#allocation8 + $0x24] sm:$0xf]
    %v806 = vld [vmem:[#allocation8 + $0x28] sm:$0xf]
    %v807 = vld [vmem:[#allocation8 + $0x2c] sm:$0xf]
    %v808 = vld [vmem:[#allocation8 + $0x30] sm:$0xf]
    %v809 = vld [vmem:[#allocation8 + $0x34] sm:$0xf]
    %v810 = vld [vmem:[#allocation8 + $0x38] sm:$0xf]
    %v811 = vld [vmem:[#allocation8 + $0x3c] sm:$0xf]
    %v812 = vld [vmem:[%s5] sm:$0x1]
    %v814 = vlaneseq
    %v815 = vshrl.u32 %v814, 7
    %v816 = vsub.s32 0, %v815
    %v817 = vrot.slane %v812, %v816
    %v835 = vunpack.c.l.b16 %v796
    %v836 = vunpack.c.l.b16 %v797
    %v837 = vunpack.c.l.b16 %v798
    %v838 = vunpack.c.l.b16 %v799
    %v839 = vunpack.c.l.b16 %v800
    %v840 = vunpack.c.l.b16 %v801
    %v841 = vunpack.c.l.b16 %v802
    %v842 = vunpack.c.l.b16 %v803
    %v843 = vunpack.c.l.b16 %v804
    %v844 = vunpack.c.l.b16 %v805
    %v845 = vunpack.c.l.b16 %v806
    %v846 = vunpack.c.l.b16 %v807
    %v847 = vunpack.c.l.b16 %v808
    %v848 = vunpack.c.l.b16 %v809
    %v849 = vunpack.c.l.b16 %v810
    %v850 = vunpack.c.l.b16 %v811
    %v851 = vpack.c.b16 %v836, %v835
    %v852 = vpack.c.b16 %v838, %v837
    %v853 = vpack.c.b16 %v840, %v839
    %v854 = vpack.c.b16 %v842, %v841
    %v855 = vpack.c.b16 %v844, %v843
    %v856 = vpack.c.b16 %v846, %v845
    %v857 = vpack.c.b16 %v848, %v847
    %v858 = vpack.c.b16 %v850, %v849
    %867 = vmatprep.subr.bf16.mxu0 0
    %868 = vmatpush1.bf16.msra.mxu0 %v851
    %869 = vmatprep.subr.bf16.mxu0 0
    %870 = vmatpush1.bf16.msra.mxu0 %v852
    %871 = vmatprep.subr.bf16.mxu0 0
    %872 = vmatpush1.bf16.msra.mxu0 %v853
    %873 = vmatprep.subr.bf16.mxu0 0
    %874 = vmatpush1.bf16.msra.mxu0 %v854
    %875 = vmatprep.subr.bf16.mxu0 0
    %876 = vmatpush1.bf16.msra.mxu0 %v855
    %877 = vmatprep.subr.bf16.mxu0 0
    %878 = vmatpush1.bf16.msra.mxu0 %v856
    %879 = vmatprep.subr.bf16.mxu0 0
    %880 = vmatpush1.bf16.msra.mxu0 %v857
    %881 = vmatprep.subr.bf16.mxu0 0
    %882 = vmatpush1.bf16.msra.mxu0 %v858
    %883 = vmatprep.subr.bf16.mxu0 0
    %884 = vmatpush1.bf16.msra.mxu0 0
    %885 = vmatprep.subr.bf16.mxu0 0
    %886 = vmatpush1.bf16.msra.mxu0 0
    %887 = vmatprep.subr.bf16.mxu0 0
    %888 = vmatpush1.bf16.msra.mxu0 0
    %889 = vmatprep.subr.bf16.mxu0 0
    %890 = vmatpush1.bf16.msra.mxu0 0
    %891 = vmatprep.subr.bf16.mxu0 0
    %892 = vmatpush1.bf16.msra.mxu0 0
    %893 = vmatprep.subr.bf16.mxu0 0
    %894 = vmatpush1.bf16.msra.mxu0 0
    %895 = vmatprep.subr.bf16.mxu0 0
    %896 = vmatpush1.bf16.msra.mxu0 0
    %897 = vmatprep.subr.bf16.mxu0 0
    %898 = vmatpush1.bf16.msra.mxu0 0
    %899 = vmatprep.mubr.bf16.mxu0 0
    %900 = vmatmul.mubr.bf16.gmra.mrb[0].mxu0 %v795
    %v901 = vpop.f32.mrb[0].mxu0
    %v902 = vadd.f32 %v817, %v901
    %v903 = vpop.f32.mrb[0].mxu0
    %v904 = vpop.f32.mrb[0].mxu0
    %v905 = vpop.f32.mrb[0].mxu0
    %906 = vdwg.mxu0
    %v907 = vmax.f32 %v902, 0.0
    %v908 = vpack.c.bf16 %v907, %v907
    %v909 = vld [vmem:[#allocation10] sm:$0xf]
    %v910 = vld [vmem:[#allocation10 + $0x4] sm:$0xf]
    %v911 = vld [vmem:[#allocation10 + $0x8] sm:$0xf]
    %v912 = vld [vmem:[#allocation10 + $0xc] sm:$0xf]
    %v913 = vld [vmem:[#allocation10 + $0x10] sm:$0xf]
    %v914 = vld [vmem:[#allocation10 + $0x14] sm:$0xf]
    %v915 = vld [vmem:[#allocation10 + $0x18] sm:$0xf]
    %v916 = vld [vmem:[#allocation10 + $0x1c] sm:$0xf]
    %v917 = vld [vmem:[#allocation10 + $0x20] sm:$0xf]
    %v918 = vld [vmem:[#allocation10 + $0x24] sm:$0xf]
    %v919 = vld [vmem:[#allocation10 + $0x28] sm:$0xf]
    %v920 = vld [vmem:[#allocation10 + $0x2c] sm:$0xf]
    %v921 = vld [vmem:[#allocation10 + $0x30] sm:$0xf]
    %v922 = vld [vmem:[#allocation10 + $0x34] sm:$0xf]
    %v923 = vld [vmem:[#allocation10 + $0x38] sm:$0xf]
    %v924 = vld [vmem:[#allocation10 + $0x3c] sm:$0xf]
    %v925 = vld [vmem:[%s7] sm:$0x1]
    %v927 = vlaneseq
    %v928 = vshrl.u32 %v927, 7
    %v929 = vsub.s32 0, %v928
    %v930 = vrot.slane %v925, %v929
    %v948 = vunpack.c.l.b16 %v909
    %v949 = vunpack.c.l.b16 %v910
    %v950 = vunpack.c.l.b16 %v911
    %v951 = vunpack.c.l.b16 %v912
    %v952 = vunpack.c.l.b16 %v913
    %v953 = vunpack.c.l.b16 %v914
    %v954 = vunpack.c.l.b16 %v915
    %v955 = vunpack.c.l.b16 %v916
    %v956 = vunpack.c.l.b16 %v917
    %v957 = vunpack.c.l.b16 %v918
    %v958 = vunpack.c.l.b16 %v919
    %v959 = vunpack.c.l.b16 %v920
    %v960 = vunpack.c.l.b16 %v921
    %v961 = vunpack.c.l.b16 %v922
    %v962 = vunpack.c.l.b16 %v923
    %v963 = vunpack.c.l.b16 %v924
    %v964 = vpack.c.b16 %v949, %v948
    %v965 = vpack.c.b16 %v951, %v950
    %v966 = vpack.c.b16 %v953, %v952
    %v967 = vpack.c.b16 %v955, %v954
    %v968 = vpack.c.b16 %v957, %v956
    %v969 = vpack.c.b16 %v959, %v958
    %v970 = vpack.c.b16 %v961, %v960
    %v971 = vpack.c.b16 %v963, %v962
    %980 = vmatprep.subr.bf16.mxu0 0
    %981 = vmatpush1.bf16.msra.mxu0 %v964
    %982 = vmatprep.subr.bf16.mxu0 0
    %983 = vmatpush1.bf16.msra.mxu0 %v965
    %984 = vmatprep.subr.bf16.mxu0 0
    %985 = vmatpush1.bf16.msra.mxu0 %v966
    %986 = vmatprep.subr.bf16.mxu0 0
    %987 = vmatpush1.bf16.msra.mxu0 %v967
    %988 = vmatprep.subr.bf16.mxu0 0
    %989 = vmatpush1.bf16.msra.mxu0 %v968
    %990 = vmatprep.subr.bf16.mxu0 0
    %991 = vmatpush1.bf16.msra.mxu0 %v969
    %992 = vmatprep.subr.bf16.mxu0 0
    %993 = vmatpush1.bf16.msra.mxu0 %v970
    %994 = vmatprep.subr.bf16.mxu0 0
    %995 = vmatpush1.bf16.msra.mxu0 %v971
    %996 = vmatprep.subr.bf16.mxu0 0
    %997 = vmatpush1.bf16.msra.mxu0 0
    %998 = vmatprep.subr.bf16.mxu0 0
    %999 = vmatpush1.bf16.msra.mxu0 0
    %1000 = vmatprep.subr.bf16.mxu0 0
    %1001 = vmatpush1.bf16.msra.mxu0 0
    %1002 = vmatprep.subr.bf16.mxu0 0
    %1003 = vmatpush1.bf16.msra.mxu0 0
    %1004 = vmatprep.subr.bf16.mxu0 0
    %1005 = vmatpush1.bf16.msra.mxu0 0
    %1006 = vmatprep.subr.bf16.mxu0 0
    %1007 = vmatpush1.bf16.msra.mxu0 0
    %1008 = vmatprep.subr.bf16.mxu0 0
    %1009 = vmatpush1.bf16.msra.mxu0 0
    %1010 = vmatprep.subr.bf16.mxu0 0
    %1011 = vmatpush1.bf16.msra.mxu0 0
    %1012 = vmatprep.mubr.bf16.mxu0 0
    %1013 = vmatmul.mubr.bf16.gmra.mrb[0].mxu0 %v908
    %v1014 = vpop.f32.mrb[0].mxu0
    %v1015 = vadd.f32 %v930, %v1014
    %v1016 = vpop.f32.mrb[0].mxu0
    %v1017 = vpop.f32.mrb[0].mxu0
    %v1018 = vpop.f32.mrb[0].mxu0
    %1019 = vdwg.mxu0
    %1020 = vmax.xlane.f32.xlu0 %v1015
    %v1021 = vpop.xlane.xlu0 %1020
    %v1022 = vsub.f32 %v1015, %v1021
    %v1023 = vmul.f32 %v1022, 1.442695
    %v1024 = vpow.pop %v1023
    %1025 = vadd.xlane.f32.xlu0 %v1024
    %v1026 = vpop.xlane.xlu0 %1025
    %v1027 = vlog2.pop %v1026
    %v1028 = vmul.f32 %v1027, 0.6931472
    %v1029 = vsub.f32 %v1022, %v1028
    %1030 = vst [vmem:[#allocation11] sm:$0xff] %v1029
    // Predicated region
    $region54: #{tpu_custom_call.1} parent=1 // pred_check
      _
    $region55: #{tpu_custom_call.1} parent=1 // pred_check_branch
      %1032 = sbr.rel (0) target = $region57
    $region56: #{tpu_custom_call.1} parent=1 // pred_region
      %s1034 = ssub.s32 128, 128
      %1035 = vsyncadd [#allocation4], %s1034
      %s1037 = sshll.u32 [#allocation11], 4
      %s1038 = int_to_ptr.vmem [resolvable:$true] %s1037
      %1040 = dma.vmem_to_hbm [thread:$0]  %s1038, 128, %s8, [#allocation4]
    $region57: #{tpu_custom_call.1} parent=1 // pred_fallthru
      _
    // Predicated region
    $region58: #{tpu_custom_call.1} parent=1 // pred_check
      _
    $region59: #{tpu_custom_call.1} parent=1 // pred_check_branch
      %1042 = sbr.rel (0) target = $region61
    $region60: #{tpu_custom_call.1} parent=1 // pred_region
      %1043 = dma.done [#allocation4], 128
    $region61: #{tpu_custom_call.1} parent=1 // pred_fallthru
      _
    %1044 = vsyncpa [#allocation3], 1
    %1045 = vsyncpa [#allocation6], 1
    %1046 = vsyncpa [#allocation9], 1
    %1047 = vsyncpa [#allocation4], 1

</llo_original>
